<compile_context>
chip_gen: v7x
topology: tpu7x:2x2x1
jax: 0.10.0
libtpu: 0.0.40
codegen_flags: <defaults>
</compile_context>

<pallas_src>
import functools

import jax
import jax.numpy as jnp
from jax.experimental import pallas as pl
from jax.experimental.pallas import tpu as pltpu

N_ACTIONS = 14
N_STATES = 165
HIDDEN = 900

# Hidden dim padded to a lane multiple (prep-time only; padded b1 columns and
# padded w2 rows are zero, so padding cannot leak into the 14 real outputs).
H_PAD = 1024


def _round_up(x, m):
    return (x + m - 1) // m * m


def _net_kernel(x_ref, w1_ref, b1_ref, w2_ref, b2_ref, o_ref):
    # fc1: (TB, 165)bf16 @ (165, 1024)bf16 -> f32 accumulate on the MXU.
    x = x_ref[...].astype(jnp.bfloat16)
    h = jnp.dot(x, w1_ref[...], preferred_element_type=jnp.float32)
    h = jnp.maximum(h + b1_ref[...], 0.0)
    # out: (TB, 1024)bf16 @ (1024, 14)bf16 -> f32 accumulate; 14-wide store is
    # masked but the store slot has huge slack here.
    y = jnp.dot(h.astype(jnp.bfloat16), w2_ref[...],
                preferred_element_type=jnp.float32)
    o_ref[...] = y + b2_ref[...]


def prepare_params(w1, b1, w2, b2):
    """One-time prep: weights as bf16 (halves the dominant weight DMA) with
    f32 biases; hidden dim zero-padded to H_PAD so both matmul N/K dims that
    matter are lane-aligned.  Padded hidden units get zero bias AND zero w2
    rows, so the valid outputs are unchanged."""
    w1p = jnp.zeros((N_STATES, H_PAD), jnp.bfloat16)
    w1p = w1p.at[:, :HIDDEN].set(w1.astype(jnp.bfloat16))
    b1p = jnp.zeros((1, H_PAD), jnp.float32).at[:, :HIDDEN].set(
        b1.astype(jnp.float32).reshape(1, HIDDEN))
    w2p = jnp.zeros((H_PAD, N_ACTIONS), jnp.bfloat16)
    w2p = w2p.at[:HIDDEN, :].set(w2.astype(jnp.bfloat16))
    b2p = b2.astype(jnp.float32).reshape(1, N_ACTIONS)
    return w1p, b1p, w2p, b2p


@functools.partial(jax.jit, static_argnames=("block_b",))
def net_forward(x, w1p, b1p, w2p, b2p, block_b=512):
    """x: (B, N_STATES) float32.  Returns (B, N_ACTIONS) float32."""
    B = x.shape[0]

    # Tile count: enough tiles to keep each tile <= block_b rows, and at
    # least 2 tiles once B >= 16 so both v7x TensorCores get work.
    num_tiles = max(pl.cdiv(B, block_b), 2 if B >= 16 else 1)
    # Tile size: spread B as evenly as possible (minimizes ragged padding),
    # rounded up to the 8-sublane granule.
    TB = _round_up(pl.cdiv(B, num_tiles), 8)
    grid = (pl.cdiv(B, TB),)

    return pl.pallas_call(
        _net_kernel,
        out_shape=jax.ShapeDtypeStruct((B, N_ACTIONS), jnp.float32),
        grid=grid,
        in_specs=[
            # x tiles move with the batch grid (pipelined DMA); last dim ==
            # full array dim (165), so no wrapper-side lane padding needed.
            pl.BlockSpec((TB, N_STATES), lambda i: (i, 0)),
            # Params: constant block index -> fetched once, VMEM-resident.
            pl.BlockSpec((N_STATES, H_PAD), lambda i: (0, 0)),
            pl.BlockSpec((1, H_PAD), lambda i: (0, 0)),
            pl.BlockSpec((H_PAD, N_ACTIONS), lambda i: (0, 0)),
            pl.BlockSpec((1, N_ACTIONS), lambda i: (0, 0)),
        ],
        # Direct (B, 14) output; ragged last tile is handled by masked stores.
        out_specs=pl.BlockSpec((TB, N_ACTIONS), lambda i: (i, 0)),
        compiler_params=pltpu.CompilerParams(
            dimension_semantics=("parallel",),   # v7x: shard tiles over 2 TCs
            vmem_limit_bytes=32 << 20,           # explicit; v5e default is 16 MiB
        ),
    )(x, w1p, b1p, w2p, b2p)


def init_params(key):
    """Mirrors Net.__init__: weights ~ Normal(0, 0.1); biases keep PyTorch's
    default Uniform(-1/sqrt(fan_in), 1/sqrt(fan_in)).  Weights stored
    transposed as (in_features, out_features)."""
    k1, k2, k3, k4 = jax.random.split(key, 4)
    w1 = 0.1 * jax.random.normal(k1, (N_STATES, HIDDEN), dtype=jnp.float32)
    bound1 = 1.0 / jnp.sqrt(jnp.float32(N_STATES))
    b1 = jax.random.uniform(k2, (1, HIDDEN), minval=-bound1, maxval=bound1,
                            dtype=jnp.float32)
    w2 = 0.1 * jax.random.normal(k3, (HIDDEN, N_ACTIONS), dtype=jnp.float32)
    bound2 = 1.0 / jnp.sqrt(jnp.float32(HIDDEN))
    b2 = jax.random.uniform(k4, (1, N_ACTIONS), minval=-bound2, maxval=bound2,
                            dtype=jnp.float32)
    return w1, b1, w2, b2


def reference_forward(x, w1, b1, w2, b2):
    """Pure-JAX reference mirroring the kernel's bf16-input / f32-accumulate math."""
    xq = x.astype(jnp.bfloat16).astype(jnp.float32)
    w1q = w1.astype(jnp.bfloat16).astype(jnp.float32)
    w2q = w2.astype(jnp.bfloat16).astype(jnp.float32)
    h = jnp.maximum(xq @ w1q + b1, 0.0)
    hq = h.astype(jnp.bfloat16).astype(jnp.float32)
    return hq @ w2q + b2


if __name__ == "__main__":
    key = jax.random.PRNGKey(0)
    kp, kx1, kx2, kx3 = jax.random.split(key, 4)

    w1, b1, w2, b2 = init_params(kp)
    params = prepare_params(w1, b1, w2, b2)

    # Action-selection-sized batches (single tile, ragged block for B=1).
    for B in (1, 8):
        x = jax.random.normal(kx1 if B == 1 else kx2, (B, N_STATES),
                              dtype=jnp.float32)
        out = jax.block_until_ready(net_forward(x, *params))
        ref = reference_forward(x, w1, b1, w2, b2)
        assert out.shape == (B, N_ACTIONS)
        assert jnp.allclose(out, ref, atol=2e-2, rtol=2e-2), float(
            jnp.max(jnp.abs(out - ref)))

    # Larger non-tile-multiple batch: two 152-row tiles (adaptive TB),
    # weights fetched once, ragged 4-row overhang masked on store.
    B2 = 300
    x2 = jax.random.normal(kx3, (B2, N_STATES), dtype=jnp.float32)
    out2 = jax.block_until_ready(net_forward(x2, *params))
    ref2 = reference_forward(x2, w1, b1, w2, b2)
    assert out2.shape == (B2, N_ACTIONS)
    assert jnp.allclose(out2, ref2, atol=2e-2, rtol=2e-2), float(
        jnp.max(jnp.abs(out2 - ref2)))

    print("KERNEL_OK")
</pallas_src>

<mosaic_0001>
module attributes {stable_mosaic.version = 11 : i64} {
  func.func @_net_kernel(%arg0: i32, %arg1: memref<8x165xf32, #tpu.memory_space<vmem>>, %arg2: memref<165x1024xbf16, #tpu.memory_space<vmem>>, %arg3: memref<1x1024xf32, #tpu.memory_space<vmem>>, %arg4: memref<1024x14xbf16, #tpu.memory_space<vmem>>, %arg5: memref<1x14xf32, #tpu.memory_space<vmem>>, %arg6: memref<8x14xf32, #tpu.memory_space<vmem>>) attributes {dimension_semantics = [#tpu.dimension_semantics<parallel>], iteration_bounds = array<i64: 1>, scalar_prefetch = 0 : i64, scratch_operands = 0 : i64, tpu.core_type = #tpu.core_type<tc>, window_params = [{transform_indices = @transform_0, window_bounds = array<i64: 8, 165>}, {pipeline_mode = #tpu.pipeline_mode<synchronous>, transform_indices = @transform_1, window_bounds = array<i64: 165, 1024>}, {pipeline_mode = #tpu.pipeline_mode<synchronous>, transform_indices = @transform_2, window_bounds = array<i64: 1, 1024>}, {pipeline_mode = #tpu.pipeline_mode<synchronous>, transform_indices = @transform_3, window_bounds = array<i64: 1024, 14>}, {pipeline_mode = #tpu.pipeline_mode<synchronous>, transform_indices = @transform_4, window_bounds = array<i64: 1, 14>}, {transform_indices = @transform_5, window_bounds = array<i64: 8, 14>}]} {
    %c0 = arith.constant 0 : index
    %c0_0 = arith.constant 0 : index
    %0 = vector.load %arg1[%c0, %c0_0] : memref<8x165xf32, #tpu.memory_space<vmem>>, vector<8x165xf32>
    %1 = arith.truncf %0 : vector<8x165xf32> to vector<8x165xbf16>
    %c0_1 = arith.constant 0 : index
    %c0_2 = arith.constant 0 : index
    %2 = vector.load %arg2[%c0_1, %c0_2] : memref<165x1024xbf16, #tpu.memory_space<vmem>>, vector<165x1024xbf16>
    %cst = arith.constant dense<0.000000e+00> : vector<8x1024xf32>
    %3 = tpu.matmul %1, %2, %cst {dimension_numbers = #tpu.dot_dimension_numbers<[1], [0], [0], [1], [0, 0, 1, 1], [], []>} : vector<8x165xbf16>, vector<165x1024xbf16>, vector<8x1024xf32> -> vector<8x1024xf32>
    %c0_3 = arith.constant 0 : index
    %c0_4 = arith.constant 0 : index
    %4 = vector.load %arg3[%c0_3, %c0_4] : memref<1x1024xf32, #tpu.memory_space<vmem>>, vector<1x1024xf32>
    %5 = vector.broadcast %4 : vector<1x1024xf32> to vector<8x1024xf32>
    %6 = arith.addf %3, %5 : vector<8x1024xf32>
    %cst_5 = arith.constant 0.000000e+00 : f32
    %7 = vector.broadcast %cst_5 : f32 to vector<8x1024xf32>
    %8 = arith.maximumf %6, %7 : vector<8x1024xf32>
    %9 = arith.truncf %8 : vector<8x1024xf32> to vector<8x1024xbf16>
    %c0_6 = arith.constant 0 : index
    %c0_7 = arith.constant 0 : index
    %10 = vector.load %arg4[%c0_6, %c0_7] : memref<1024x14xbf16, #tpu.memory_space<vmem>>, vector<1024x14xbf16>
    %cst_8 = arith.constant dense<0.000000e+00> : vector<8x14xf32>
    %11 = tpu.matmul %9, %10, %cst_8 {dimension_numbers = #tpu.dot_dimension_numbers<[1], [0], [0], [1], [0, 0, 1, 1], [], []>} : vector<8x1024xbf16>, vector<1024x14xbf16>, vector<8x14xf32> -> vector<8x14xf32>
    %c0_9 = arith.constant 0 : index
    %c0_10 = arith.constant 0 : index
    %12 = vector.load %arg5[%c0_9, %c0_10] : memref<1x14xf32, #tpu.memory_space<vmem>>, vector<1x14xf32>
    %13 = vector.broadcast %12 : vector<1x14xf32> to vector<8x14xf32>
    %14 = arith.addf %11, %13 : vector<8x14xf32>
    %c0_11 = arith.constant 0 : index
    %c0_12 = arith.constant 0 : index
    %15 = vector.load %arg6[%c0_11, %c0_12] : memref<8x14xf32, #tpu.memory_space<vmem>>, vector<8x14xf32>
    tpu.vector_store %arg6[%c0_11, %c0_12], %14 {strides = array<i32>} : memref<8x14xf32, #tpu.memory_space<vmem>>, vector<8x14xf32>,
    return
  }
  func.func @transform_0(%arg0: i32) -> (i32, i32) {
    %c0_i32 = arith.constant 0 : i32
    %c0_i32_0 = arith.constant 0 : i32
    return %arg0, %c0_i32 : i32, i32
  }
  func.func @transform_1(%arg0: i32) -> (i32, i32) {
    %c0_i32 = arith.constant 0 : i32
    %c0_i32_0 = arith.constant 0 : i32
    %c0_i32_1 = arith.constant 0 : i32
    return %c0_i32, %c0_i32_0 : i32, i32
  }
  func.func @transform_2(%arg0: i32) -> (i32, i32) {
    %c0_i32 = arith.constant 0 : i32
    %c0_i32_0 = arith.constant 0 : i32
    %c0_i32_1 = arith.constant 0 : i32
    return %c0_i32, %c0_i32_0 : i32, i32
  }
  func.func @transform_3(%arg0: i32) -> (i32, i32) {
    %c0_i32 = arith.constant 0 : i32
    %c0_i32_0 = arith.constant 0 : i32
    %c0_i32_1 = arith.constant 0 : i32
    return %c0_i32, %c0_i32_0 : i32, i32
  }
  func.func @transform_4(%arg0: i32) -> (i32, i32) {
    %c0_i32 = arith.constant 0 : i32
    %c0_i32_0 = arith.constant 0 : i32
    %c0_i32_1 = arith.constant 0 : i32
    return %c0_i32, %c0_i32_0 : i32, i32
  }
  func.func @transform_5(%arg0: i32) -> (i32, i32) {
    %c0_i32 = arith.constant 0 : i32
    %c0_i32_0 = arith.constant 0 : i32
    return %arg0, %c0_i32 : i32, i32
  }
}

</mosaic_0001>

<llo_original>
// kernel: net_forward.1
$region0: #{net_forward.1}
  #allocation0 [shape = 'u32[]', space=smem, size = 0x4, offset = 0x4, fixed_abs, tag = 'smem constant byte address 0x4 - core index']
  #allocation1 [shape = 'u32[144,128]{1,0:T(1,128)}', space=vmem, size = 0x12000, scoped, tag = 'internal scratch']
  %s0 = inlined_call_operand.vmem [shape: f32[1,165], index: 0, kind: input, shape index: {}]
  %s1 = inlined_call_operand.hbm [shape: bf16[165,1024], index: 1, kind: input, shape index: {}]
  %s2 = inlined_call_operand.vmem [shape: f32[1,1024], index: 2, kind: input, shape index: {}]
  %s3 = inlined_call_operand.vmem [shape: bf16[1024,14], index: 3, kind: input, shape index: {}]
  %s4 = inlined_call_operand.vmem [shape: f32[1,14], index: 4, kind: input, shape index: {}]
  %s5 = inlined_call_operand.hbm [shape: f32[1,14], index: 5, kind: output, shape index: {}]
  %s6 = sld [smem:[#allocation0]]
  $region34: #{net_forward.1} parent=0
    _
  %s8 = ssub.s32 1, %s6
  %s9 = scalar_select 0, %s8, %s6
  $region1: #{net_forward.1} parent=0
    #allocation2 [shape = 'u8[344064]{0}', space=vmem, size = 0x54000, scoped, tag = 'input window, operand 1, single buffered']
    #allocation3 [shape = 's32[1]{0}', space=sflag, size = 0x4, scoped, tag = 'scoped memory for net_forward.1']
    #allocation4 [shape = 's32[1]{0}', space=sflag, size = 0x4, scoped, tag = 'scoped memory for net_forward.1']
    #allocation5 [shape = 'u8[4096]{0}', space=vmem, size = 0x1000, scoped, tag = 'output window, operand 0, single buffered']
    %10 = vsyncpa [#allocation3], 0
    %11 = vsyncpa [#allocation4], 0
    // Predicated region
    $region2: #{net_forward.1} parent=1 // pred_check
      _
    $region3: #{net_forward.1} parent=1 // pred_check_branch
      %13 = sbr.rel (0) target = $region5
    $region4: #{net_forward.1} parent=1 // pred_region
      _
    $region5: #{net_forward.1} parent=1 // pred_fallthru
      _
    // Predicated region
    $region6: #{net_forward.1} parent=1 // pred_check
      _
    $region7: #{net_forward.1} parent=1 // pred_check_branch
      %15 = sbr.rel (0) target = $region9
    $region8: #{net_forward.1} parent=1 // pred_region
      %s17 = ssub.s32 10752, 10752
      %18 = vsyncadd [#allocation3], %s17
      %s19 = sshll.u32 [#allocation2], 4
      %s20 = int_to_ptr.vmem [resolvable:$true] %s19
      %25 = dma.hbm_to_vmem [thread:$0]  %s1, 10752, %s20, [#allocation3], 512, 512, 32
    $region9: #{net_forward.1} parent=1 // pred_fallthru
      _
    // Predicated region
    $region10: #{net_forward.1} parent=1 // pred_check
      _
    $region11: #{net_forward.1} parent=1 // pred_check_branch
      %27 = sbr.rel (0) target = $region13
    $region12: #{net_forward.1} parent=1 // pred_region
      _
    $region13: #{net_forward.1} parent=1 // pred_fallthru
      _
    // Predicated region
    $region14: #{net_forward.1} parent=1 // pred_check
      _
    $region15: #{net_forward.1} parent=1 // pred_check_branch
      %29 = sbr.rel (0) target = $region17
    $region16: #{net_forward.1} parent=1 // pred_region
      _
    $region17: #{net_forward.1} parent=1 // pred_fallthru
      _
    // Predicated region
    $region18: #{net_forward.1} parent=1 // pred_check
      _
    $region19: #{net_forward.1} parent=1 // pred_check_branch
      %31 = sbr.rel (0) target = $region21
    $region20: #{net_forward.1} parent=1 // pred_region
      _
    $region21: #{net_forward.1} parent=1 // pred_fallthru
      _
    // Predicated region
    $region22: #{net_forward.1} parent=1 // pred_check
      _
    $region23: #{net_forward.1} parent=1 // pred_check_branch
      %33 = sbr.rel (0) target = $region25
    $region24: #{net_forward.1} parent=1 // pred_region
      %34 = dma.done [#allocation3], 10752
    $region25: #{net_forward.1} parent=1 // pred_fallthru
      _
    %v36 = vld [vmem:[%s0] sm:$0x3]
    %v37 = vld [vmem:[%s0 + $0x2] sm:$0x3]
    %v38 = vld [vmem:[%s0 + $0x4] sm:$0x3]
    %v39 = vld [vmem:[%s0 + $0x6] sm:$0x3]
    %v40 = vld [vmem:[%s0 + $0x8] sm:$0x3]
    %v41 = vld [vmem:[%s0 + $0xa] sm:$0x3]
    %v42 = vld [vmem:[%s0 + $0xc] sm:$0x3]
    %v43 = vld [vmem:[%s0 + $0xe] sm:$0x3]
    %v52 = vcombine.low %v36, %v37
    %v53 = vcombine.low %v38, %v39
    %v54 = vcombine.low %v40, %v41
    %v55 = vcombine.low %v42, %v43
    %v57 = vunpack.c.l.s4 1966171168
    %v58 = vunpack.c.0.s8 %v57
    %v59 = vlaneseq
    %v60 = vshrl.u32 %v59, 7
    %v61 = vsub.s32 %v58, %v60
    %v62 = vrot.slane %v52, %v61
    %v64 = vunpack.c.l.s4 1966171168
    %v65 = vunpack.c.0.s8 %v64
    %v66 = vlaneseq
    %v67 = vshrl.u32 %v66, 7
    %v68 = vsub.s32 %v65, %v67
    %v69 = vrot.slane %v53, %v68
    %v71 = vunpack.c.l.s4 1966171168
    %v72 = vunpack.c.0.s8 %v71
    %v73 = vlaneseq
    %v74 = vshrl.u32 %v73, 7
    %v75 = vsub.s32 %v72, %v74
    %v76 = vrot.slane %v54, %v75
    %v78 = vunpack.c.l.s4 1966171168
    %v79 = vunpack.c.0.s8 %v78
    %v80 = vlaneseq
    %v81 = vshrl.u32 %v80, 7
    %v82 = vsub.s32 %v79, %v81
    %v83 = vrot.slane %v55, %v82
    %v84 = vcombine.low %v62, %v69
    %v85 = vcombine.high %v62, %v69
    %v86 = vcombine.low %v76, %v83
    %v87 = vcombine.high %v76, %v83
    %v89 = vunpack.c.l.s4 1966171168
    %v90 = vunpack.c.0.s8 %v89
    %v91 = vlaneseq
    %v92 = vshrl.u32 %v91, 7
    %v93 = vsub.s32 %v90, %v92
    %v94 = vrot.slane %v84, %v93
    %v96 = vunpack.c.l.s4 1966171168
    %v97 = vunpack.c.0.s8 %v96
    %v98 = vlaneseq
    %v99 = vshrl.u32 %v98, 7
    %v100 = vsub.s32 %v97, %v99
    %v101 = vrot.slane %v85, %v100
    %v103 = vunpack.c.l.s4 1966171168
    %v104 = vunpack.c.0.s8 %v103
    %v105 = vlaneseq
    %v106 = vshrl.u32 %v105, 7
    %v107 = vsub.s32 %v104, %v106
    %v108 = vrot.slane %v86, %v107
    %v110 = vunpack.c.l.s4 1966171168
    %v111 = vunpack.c.0.s8 %v110
    %v112 = vlaneseq
    %v113 = vshrl.u32 %v112, 7
    %v114 = vsub.s32 %v111, %v113
    %v115 = vrot.slane %v87, %v114
    %v116 = vcombine.low %v94, %v108
    %v117 = vcombine.low %v101, %v115
    %v120 = vpack.c.bf16 %v116, %v116
    %v121 = vpack.c.bf16 %v117, %v117
    %v122 = vld [vmem:[#allocation2] sm:$0xff]
    %v123 = vld [vmem:[#allocation2 + $0x8] sm:$0xff]
    %v124 = vld [vmem:[#allocation2 + $0x10] sm:$0xff]
    %v125 = vld [vmem:[#allocation2 + $0x18] sm:$0xff]
    %v126 = vld [vmem:[#allocation2 + $0x20] sm:$0xff]
    %v127 = vld [vmem:[#allocation2 + $0x28] sm:$0xff]
    %v128 = vld [vmem:[#allocation2 + $0x30] sm:$0xff]
    %v129 = vld [vmem:[#allocation2 + $0x38] sm:$0xff]
    %v130 = vld [vmem:[#allocation2 + $0x40] sm:$0xff]
    %v131 = vld [vmem:[#allocation2 + $0x48] sm:$0xff]
    %v132 = vld [vmem:[#allocation2 + $0x50] sm:$0xff]
    %v133 = vld [vmem:[#allocation2 + $0x58] sm:$0xff]
    %v134 = vld [vmem:[#allocation2 + $0x60] sm:$0xff]
    %v135 = vld [vmem:[#allocation2 + $0x68] sm:$0xff]
    %v136 = vld [vmem:[#allocation2 + $0x70] sm:$0xff]
    %v137 = vld [vmem:[#allocation2 + $0x78] sm:$0xff]
    %v138 = vld [vmem:[#allocation2 + $0x80] sm:$0xff]
    %v139 = vld [vmem:[#allocation2 + $0x88] sm:$0xff]
    %v140 = vld [vmem:[#allocation2 + $0x90] sm:$0xff]
    %v141 = vld [vmem:[#allocation2 + $0x98] sm:$0xff]
    %v142 = vld [vmem:[#allocation2 + $0xa0] sm:$0xff]
    %v143 = vld [vmem:[#allocation2 + $0xa8] sm:$0xff]
    %v144 = vld [vmem:[#allocation2 + $0xb0] sm:$0xff]
    %v145 = vld [vmem:[#allocation2 + $0xb8] sm:$0xff]
    %v146 = vld [vmem:[#allocation2 + $0xc0] sm:$0xff]
    %v147 = vld [vmem:[#allocation2 + $0xc8] sm:$0xff]
    %v148 = vld [vmem:[#allocation2 + $0xd0] sm:$0xff]
    %v149 = vld [vmem:[#allocation2 + $0xd8] sm:$0xff]
    %v150 = vld [vmem:[#allocation2 + $0xe0] sm:$0xff]
    %v151 = vld [vmem:[#allocation2 + $0xe8] sm:$0xff]
    %v152 = vld [vmem:[#allocation2 + $0xf0] sm:$0xff]
    %v153 = vld [vmem:[#allocation2 + $0xf8] sm:$0xff]
    %v154 = vld [vmem:[#allocation2 + $0x100] sm:$0xff]
    %v155 = vld [vmem:[#allocation2 + $0x108] sm:$0xff]
    %v156 = vld [vmem:[#allocation2 + $0x110] sm:$0xff]
    %v157 = vld [vmem:[#allocation2 + $0x118] sm:$0xff]
    %v158 = vld [vmem:[#allocation2 + $0x120] sm:$0xff]
    %v159 = vld [vmem:[#allocation2 + $0x128] sm:$0xff]
    %v160 = vld [vmem:[#allocation2 + $0x130] sm:$0xff]
    %v161 = vld [vmem:[#allocation2 + $0x138] sm:$0xff]
    %v162 = vld [vmem:[#allocation2 + $0x140] sm:$0xff]
    %v163 = vld [vmem:[#allocation2 + $0x148] sm:$0xff]
    %v164 = vld [vmem:[#allocation2 + $0x150] sm:$0xff]
    %v165 = vld [vmem:[#allocation2 + $0x158] sm:$0xff]
    %v166 = vld [vmem:[#allocation2 + $0x160] sm:$0xff]
    %v167 = vld [vmem:[#allocation2 + $0x168] sm:$0xff]
    %v168 = vld [vmem:[#allocation2 + $0x170] sm:$0xff]
    %v169 = vld [vmem:[#allocation2 + $0x178] sm:$0xff]
    %v170 = vld [vmem:[#allocation2 + $0x180] sm:$0xff]
    %v171 = vld [vmem:[#allocation2 + $0x188] sm:$0xff]
    %v172 = vld [vmem:[#allocation2 + $0x190] sm:$0xff]
    %v173 = vld [vmem:[#allocation2 + $0x198] sm:$0xff]
    %v174 = vld [vmem:[#allocation2 + $0x1a0] sm:$0xff]
    %v175 = vld [vmem:[#allocation2 + $0x1a8] sm:$0xff]
    %v176 = vld [vmem:[#allocation2 + $0x1b0] sm:$0xff]
    %v177 = vld [vmem:[#allocation2 + $0x1b8] sm:$0xff]
    %v178 = vld [vmem:[#allocation2 + $0x1c0] sm:$0xff]
    %v179 = vld [vmem:[#allocation2 + $0x1c8] sm:$0xff]
    %v180 = vld [vmem:[#allocation2 + $0x1d0] sm:$0xff]
    %v181 = vld [vmem:[#allocation2 + $0x1d8] sm:$0xff]
    %v182 = vld [vmem:[#allocation2 + $0x1e0] sm:$0xff]
    %v183 = vld [vmem:[#allocation2 + $0x1e8] sm:$0xff]
    %v184 = vld [vmem:[#allocation2 + $0x1f0] sm:$0xff]
    %v185 = vld [vmem:[#allocation2 + $0x1f8] sm:$0xff]
    %v186 = vld [vmem:[#allocation2 + $0x200] sm:$0xff]
    %v187 = vld [vmem:[#allocation2 + $0x208] sm:$0xff]
    %v188 = vld [vmem:[#allocation2 + $0x210] sm:$0xff]
    %v189 = vld [vmem:[#allocation2 + $0x218] sm:$0xff]
    %v190 = vld [vmem:[#allocation2 + $0x220] sm:$0xff]
    %v191 = vld [vmem:[#allocation2 + $0x228] sm:$0xff]
    %v192 = vld [vmem:[#allocation2 + $0x230] sm:$0xff]
    %v193 = vld [vmem:[#allocation2 + $0x238] sm:$0xff]
    %v194 = vld [vmem:[#allocation2 + $0x240] sm:$0xff]
    %v195 = vld [vmem:[#allocation2 + $0x248] sm:$0xff]
    %v196 = vld [vmem:[#allocation2 + $0x250] sm:$0xff]
    %v197 = vld [vmem:[#allocation2 + $0x258] sm:$0xff]
    %v198 = vld [vmem:[#allocation2 + $0x260] sm:$0xff]
    %v199 = vld [vmem:[#allocation2 + $0x268] sm:$0xff]
    %v200 = vld [vmem:[#allocation2 + $0x270] sm:$0xff]
    %v201 = vld [vmem:[#allocation2 + $0x278] sm:$0xff]
    %v202 = vld [vmem:[#allocation2 + $0x280] sm:$0x77]
    %v203 = vld [vmem:[#allocation2 + $0x288] sm:$0x77]
    %v204 = vld [vmem:[#allocation2 + $0x290] sm:$0x77]
    %v205 = vld [vmem:[#allocation2 + $0x298] sm:$0x77]
    %v206 = vld [vmem:[%s2] sm:$0xff]
    %v208 = vlaneseq
    %v209 = vshrl.u32 %v208, 7
    %v210 = vsub.s32 0, %v209
    %v211 = vrot.slane %v206, %v210
    %v212 = vlaneseq
    %v213 = vshrl.u32 %v212, 7
    %v214 = vsub.s32 1, %v213
    %v215 = vrot.slane %v206, %v214
    %v216 = vlaneseq
    %v217 = vshrl.u32 %v216, 7
    %v218 = vsub.s32 2, %v217
    %v219 = vrot.slane %v206, %v218
    %v220 = vlaneseq
    %v221 = vshrl.u32 %v220, 7
    %v222 = vsub.s32 3, %v221
    %v223 = vrot.slane %v206, %v222
    %v224 = vlaneseq
    %v225 = vshrl.u32 %v224, 7
    %v226 = vsub.s32 4, %v225
    %v227 = vrot.slane %v206, %v226
    %v228 = vlaneseq
    %v229 = vshrl.u32 %v228, 7
    %v230 = vsub.s32 5, %v229
    %v231 = vrot.slane %v206, %v230
    %v232 = vlaneseq
    %v233 = vshrl.u32 %v232, 7
    %v234 = vsub.s32 6, %v233
    %v235 = vrot.slane %v206, %v234
    %v236 = vlaneseq
    %v237 = vshrl.u32 %v236, 7
    %v238 = vsub.s32 7, %v237
    %v239 = vrot.slane %v206, %v238
    %v332 = vunpack.c.l.b16 %v122
    %v333 = vunpack.c.h.b16 %v122
    %v334 = vunpack.c.l.b16 %v123
    %v335 = vunpack.c.h.b16 %v123
    %v336 = vunpack.c.l.b16 %v124
    %v337 = vunpack.c.h.b16 %v124
    %v338 = vunpack.c.l.b16 %v125
    %v339 = vunpack.c.h.b16 %v125
    %v340 = vunpack.c.l.b16 %v126
    %v341 = vunpack.c.h.b16 %v126
    %v342 = vunpack.c.l.b16 %v127
    %v343 = vunpack.c.h.b16 %v127
    %v344 = vunpack.c.l.b16 %v128
    %v345 = vunpack.c.h.b16 %v128
    %v346 = vunpack.c.l.b16 %v129
    %v347 = vunpack.c.h.b16 %v129
    %v348 = vunpack.c.l.b16 %v130
    %v349 = vunpack.c.h.b16 %v130
    %v350 = vunpack.c.l.b16 %v131
    %v351 = vunpack.c.h.b16 %v131
    %v352 = vunpack.c.l.b16 %v132
    %v353 = vunpack.c.h.b16 %v132
    %v354 = vunpack.c.l.b16 %v133
    %v355 = vunpack.c.h.b16 %v133
    %v356 = vunpack.c.l.b16 %v134
    %v357 = vunpack.c.h.b16 %v134
    %v358 = vunpack.c.l.b16 %v135
    %v359 = vunpack.c.h.b16 %v135
    %v360 = vunpack.c.l.b16 %v136
    %v361 = vunpack.c.h.b16 %v136
    %v362 = vunpack.c.l.b16 %v137
    %v363 = vunpack.c.h.b16 %v137
    %v364 = vunpack.c.l.b16 %v138
    %v365 = vunpack.c.h.b16 %v138
    %v366 = vunpack.c.l.b16 %v139
    %v367 = vunpack.c.h.b16 %v139
    %v368 = vunpack.c.l.b16 %v140
    %v369 = vunpack.c.h.b16 %v140
    %v370 = vunpack.c.l.b16 %v141
    %v371 = vunpack.c.h.b16 %v141
    %v372 = vunpack.c.l.b16 %v142
    %v373 = vunpack.c.h.b16 %v142
    %v374 = vunpack.c.l.b16 %v143
    %v375 = vunpack.c.h.b16 %v143
    %v376 = vunpack.c.l.b16 %v144
    %v377 = vunpack.c.h.b16 %v144
    %v378 = vunpack.c.l.b16 %v145
    %v379 = vunpack.c.h.b16 %v145
    %v380 = vunpack.c.l.b16 %v146
    %v381 = vunpack.c.h.b16 %v146
    %v382 = vunpack.c.l.b16 %v147
    %v383 = vunpack.c.h.b16 %v147
    %v384 = vunpack.c.l.b16 %v148
    %v385 = vunpack.c.h.b16 %v148
    %v386 = vunpack.c.l.b16 %v149
    %v387 = vunpack.c.h.b16 %v149
    %v388 = vunpack.c.l.b16 %v150
    %v389 = vunpack.c.h.b16 %v150
    %v390 = vunpack.c.l.b16 %v151
    %v391 = vunpack.c.h.b16 %v151
    %v392 = vunpack.c.l.b16 %v152
    %v393 = vunpack.c.h.b16 %v152
    %v394 = vunpack.c.l.b16 %v153
    %v395 = vunpack.c.h.b16 %v153
    %v396 = vunpack.c.l.b16 %v154
    %v397 = vunpack.c.h.b16 %v154
    %v398 = vunpack.c.l.b16 %v155
    %v399 = vunpack.c.h.b16 %v155
    %v400 = vunpack.c.l.b16 %v156
    %v401 = vunpack.c.h.b16 %v156
    %v402 = vunpack.c.l.b16 %v157
    %v403 = vunpack.c.h.b16 %v157
    %v404 = vunpack.c.l.b16 %v158
    %v405 = vunpack.c.h.b16 %v158
    %v406 = vunpack.c.l.b16 %v159
    %v407 = vunpack.c.h.b16 %v159
    %v408 = vunpack.c.l.b16 %v160
    %v409 = vunpack.c.h.b16 %v160
    %v410 = vunpack.c.l.b16 %v161
    %v411 = vunpack.c.h.b16 %v161
    %v412 = vunpack.c.l.b16 %v162
    %v413 = vunpack.c.h.b16 %v162
    %v414 = vunpack.c.l.b16 %v163
    %v415 = vunpack.c.h.b16 %v163
    %v416 = vunpack.c.l.b16 %v164
    %v417 = vunpack.c.h.b16 %v164
    %v418 = vunpack.c.l.b16 %v165
    %v419 = vunpack.c.h.b16 %v165
    %v420 = vunpack.c.l.b16 %v166
    %v421 = vunpack.c.h.b16 %v166
    %v422 = vunpack.c.l.b16 %v167
    %v423 = vunpack.c.h.b16 %v167
    %v424 = vunpack.c.l.b16 %v168
    %v425 = vunpack.c.h.b16 %v168
    %v426 = vunpack.c.l.b16 %v169
    %v427 = vunpack.c.h.b16 %v169
    %v428 = vunpack.c.l.b16 %v170
    %v429 = vunpack.c.h.b16 %v170
    %v430 = vunpack.c.l.b16 %v171
    %v431 = vunpack.c.h.b16 %v171
    %v432 = vunpack.c.l.b16 %v172
    %v433 = vunpack.c.h.b16 %v172
    %v434 = vunpack.c.l.b16 %v173
    %v435 = vunpack.c.h.b16 %v173
    %v436 = vunpack.c.l.b16 %v174
    %v437 = vunpack.c.h.b16 %v174
    %v438 = vunpack.c.l.b16 %v175
    %v439 = vunpack.c.h.b16 %v175
    %v440 = vunpack.c.l.b16 %v176
    %v441 = vunpack.c.h.b16 %v176
    %v442 = vunpack.c.l.b16 %v177
    %v443 = vunpack.c.h.b16 %v177
    %v444 = vunpack.c.l.b16 %v178
    %v445 = vunpack.c.h.b16 %v178
    %v446 = vunpack.c.l.b16 %v179
    %v447 = vunpack.c.h.b16 %v179
    %v448 = vunpack.c.l.b16 %v180
    %v449 = vunpack.c.h.b16 %v180
    %v450 = vunpack.c.l.b16 %v181
    %v451 = vunpack.c.h.b16 %v181
    %v452 = vunpack.c.l.b16 %v182
    %v453 = vunpack.c.h.b16 %v182
    %v454 = vunpack.c.l.b16 %v183
    %v455 = vunpack.c.h.b16 %v183
    %v456 = vunpack.c.l.b16 %v184
    %v457 = vunpack.c.h.b16 %v184
    %v458 = vunpack.c.l.b16 %v185
    %v459 = vunpack.c.h.b16 %v185
    %v460 = vunpack.c.l.b16 %v186
    %v461 = vunpack.c.h.b16 %v186
    %v462 = vunpack.c.l.b16 %v187
    %v463 = vunpack.c.h.b16 %v187
    %v464 = vunpack.c.l.b16 %v188
    %v465 = vunpack.c.h.b16 %v188
    %v466 = vunpack.c.l.b16 %v189
    %v467 = vunpack.c.h.b16 %v189
    %v468 = vunpack.c.l.b16 %v190
    %v469 = vunpack.c.h.b16 %v190
    %v470 = vunpack.c.l.b16 %v191
    %v471 = vunpack.c.h.b16 %v191
    %v472 = vunpack.c.l.b16 %v192
    %v473 = vunpack.c.h.b16 %v192
    %v474 = vunpack.c.l.b16 %v193
    %v475 = vunpack.c.h.b16 %v193
    %v476 = vunpack.c.l.b16 %v194
    %v477 = vunpack.c.h.b16 %v194
    %v478 = vunpack.c.l.b16 %v195
    %v479 = vunpack.c.h.b16 %v195
    %v480 = vunpack.c.l.b16 %v196
    %v481 = vunpack.c.h.b16 %v196
    %v482 = vunpack.c.l.b16 %v197
    %v483 = vunpack.c.h.b16 %v197
    %v484 = vunpack.c.l.b16 %v198
    %v485 = vunpack.c.h.b16 %v198
    %v486 = vunpack.c.l.b16 %v199
    %v487 = vunpack.c.h.b16 %v199
    %v488 = vunpack.c.l.b16 %v200
    %v489 = vunpack.c.h.b16 %v200
    %v490 = vunpack.c.l.b16 %v201
    %v491 = vunpack.c.h.b16 %v201
    %v492 = vunpack.c.l.b16 %v202
    %v493 = vunpack.c.h.b16 %v202
    %v494 = vunpack.c.l.b16 %v203
    %v495 = vunpack.c.h.b16 %v203
    %v496 = vunpack.c.l.b16 %v204
    %v497 = vunpack.c.h.b16 %v204
    %v498 = vunpack.c.l.b16 %v205
    %v499 = vunpack.c.h.b16 %v205
    %v500 = vpack.c.b16 %v340, %v332
    %v501 = vpack.c.b16 %v341, %v333
    %v502 = vpack.c.b16 %v342, %v334
    %v503 = vpack.c.b16 %v343, %v335
    %v504 = vpack.c.b16 %v344, %v336
    %v505 = vpack.c.b16 %v345, %v337
    %v506 = vpack.c.b16 %v346, %v338
    %v507 = vpack.c.b16 %v347, %v339
    %v508 = vpack.c.b16 %v356, %v348
    %v509 = vpack.c.b16 %v357, %v349
    %v510 = vpack.c.b16 %v358, %v350
    %v511 = vpack.c.b16 %v359, %v351
    %v512 = vpack.c.b16 %v360, %v352
    %v513 = vpack.c.b16 %v361, %v353
    %v514 = vpack.c.b16 %v362, %v354
    %v515 = vpack.c.b16 %v363, %v355
    %v516 = vpack.c.b16 %v372, %v364
    %v517 = vpack.c.b16 %v373, %v365
    %v518 = vpack.c.b16 %v374, %v366
    %v519 = vpack.c.b16 %v375, %v367
    %v520 = vpack.c.b16 %v376, %v368
    %v521 = vpack.c.b16 %v377, %v369
    %v522 = vpack.c.b16 %v378, %v370
    %v523 = vpack.c.b16 %v379, %v371
    %v524 = vpack.c.b16 %v388, %v380
    %v525 = vpack.c.b16 %v389, %v381
    %v526 = vpack.c.b16 %v390, %v382
    %v527 = vpack.c.b16 %v391, %v383
    %v528 = vpack.c.b16 %v392, %v384
    %v529 = vpack.c.b16 %v393, %v385
    %v530 = vpack.c.b16 %v394, %v386
    %v531 = vpack.c.b16 %v395, %v387
    %v532 = vpack.c.b16 %v404, %v396
    %v533 = vpack.c.b16 %v405, %v397
    %v534 = vpack.c.b16 %v406, %v398
    %v535 = vpack.c.b16 %v407, %v399
    %v536 = vpack.c.b16 %v408, %v400
    %v537 = vpack.c.b16 %v409, %v401
    %v538 = vpack.c.b16 %v410, %v402
    %v539 = vpack.c.b16 %v411, %v403
    %v540 = vpack.c.b16 %v420, %v412
    %v541 = vpack.c.b16 %v421, %v413
    %v542 = vpack.c.b16 %v422, %v414
    %v543 = vpack.c.b16 %v423, %v415
    %v544 = vpack.c.b16 %v424, %v416
    %v545 = vpack.c.b16 %v425, %v417
    %v546 = vpack.c.b16 %v426, %v418
    %v547 = vpack.c.b16 %v427, %v419
    %v548 = vpack.c.b16 %v436, %v428
    %v549 = vpack.c.b16 %v437, %v429
    %v550 = vpack.c.b16 %v438, %v430
    %v551 = vpack.c.b16 %v439, %v431
    %v552 = vpack.c.b16 %v440, %v432
    %v553 = vpack.c.b16 %v441, %v433
    %v554 = vpack.c.b16 %v442, %v434
    %v555 = vpack.c.b16 %v443, %v435
    %v556 = vpack.c.b16 %v452, %v444
    %v557 = vpack.c.b16 %v453, %v445
    %v558 = vpack.c.b16 %v454, %v446
    %v559 = vpack.c.b16 %v455, %v447
    %v560 = vpack.c.b16 %v456, %v448
    %v561 = vpack.c.b16 %v457, %v449
    %v562 = vpack.c.b16 %v458, %v450
    %v563 = vpack.c.b16 %v459, %v451
    %v564 = vpack.c.b16 %v468, %v460
    %v565 = vpack.c.b16 %v469, %v461
    %v566 = vpack.c.b16 %v470, %v462
    %v567 = vpack.c.b16 %v471, %v463
    %v568 = vpack.c.b16 %v472, %v464
    %v569 = vpack.c.b16 %v473, %v465
    %v570 = vpack.c.b16 %v474, %v466
    %v571 = vpack.c.b16 %v475, %v467
    %v572 = vpack.c.b16 %v484, %v476
    %v573 = vpack.c.b16 %v485, %v477
    %v574 = vpack.c.b16 %v486, %v478
    %v575 = vpack.c.b16 %v487, %v479
    %v576 = vpack.c.b16 %v488, %v480
    %v577 = vpack.c.b16 %v489, %v481
    %v578 = vpack.c.b16 %v490, %v482
    %v579 = vpack.c.b16 %v491, %v483
    %v580 = vpack.c.b16 %v492, %v492
    %v581 = vpack.c.b16 %v493, %v493
    %v582 = vpack.c.b16 %v494, %v494
    %v583 = vpack.c.b16 %v495, %v495
    %v584 = vpack.c.b16 %v496, %v496
    %v585 = vpack.c.b16 %v497, %v497
    %v586 = vpack.c.b16 %v498, %v498
    %v587 = vpack.c.b16 %v499, %v499
    %vm668 = vcmask 302080
    %v670 = vsel %vm668, %v121, 0
    %vm672 = vcmask 1041408
    %vm673 = vcmask 1042432
    %v674 = vsel %vm672, 4294967295, 65535
    %v675 = vsel %vm673, %v674, 0
    %v677 = vand.u32 %v580, %v675
    %v680 = vand.u32 %v581, %v675
    %v683 = vand.u32 %v582, %v675
    %v686 = vand.u32 %v583, %v675
    %v689 = vand.u32 %v584, %v675
    %v692 = vand.u32 %v585, %v675
    %v695 = vand.u32 %v586, %v675
    %v698 = vand.u32 %v587, %v675
    %700 = vmatprep.subr.bf16.mxu0 %v501
    %701 = vmatpush1.bf16.msra.mxu0 %v500
    %702 = vmatprep.subr.bf16.mxu0 %v509
    %703 = vmatpush1.bf16.msra.mxu0 %v508
    %704 = vmatprep.subr.bf16.mxu0 %v517
    %705 = vmatpush1.bf16.msra.mxu0 %v516
    %706 = vmatprep.subr.bf16.mxu0 %v525
    %707 = vmatpush1.bf16.msra.mxu0 %v524
    %708 = vmatprep.subr.bf16.mxu0 %v533
    %709 = vmatpush1.bf16.msra.mxu0 %v532
    %710 = vmatprep.subr.bf16.mxu0 %v541
    %711 = vmatpush1.bf16.msra.mxu0 %v540
    %712 = vmatprep.subr.bf16.mxu0 %v549
    %713 = vmatpush1.bf16.msra.mxu0 %v548
    %714 = vmatprep.subr.bf16.mxu0 %v557
    %715 = vmatpush1.bf16.msra.mxu0 %v556
    %716 = vmatprep.subr.bf16.mxu0 %v565
    %717 = vmatpush1.bf16.msra.mxu0 %v564
    %718 = vmatprep.subr.bf16.mxu0 %v573
    %719 = vmatpush1.bf16.msra.mxu0 %v572
    %720 = vmatprep.subr.bf16.mxu0 %v680
    %721 = vmatpush1.bf16.msra.mxu0 %v677
    %722 = vmatprep.subr.bf16.mxu0 0
    %723 = vmatpush1.bf16.msra.mxu0 0
    %724 = vmatprep.subr.bf16.mxu0 0
    %725 = vmatpush1.bf16.msra.mxu0 0
    %726 = vmatprep.subr.bf16.mxu0 0
    %727 = vmatpush1.bf16.msra.mxu0 0
    %728 = vmatprep.subr.bf16.mxu0 0
    %729 = vmatpush1.bf16.msra.mxu0 0
    %730 = vmatprep.subr.bf16.mxu0 0
    %731 = vmatpush1.bf16.msra.mxu0 0
    %732 = vmatprep.mubr.bf16.mxu0 %v670
    %733 = vmatmul.mubr.bf16.gmra.mrb[0].mxu0 %v120
    %v734 = vpop.f32.mrb[0].mxu0
    %v735 = vadd.f32 %v211, %v734
    %v736 = vpop.f32.mrb[0].mxu0
    %v737 = vadd.f32 %v215, %v736
    %v738 = vpop.f32.mrb[0].mxu0
    %v739 = vpop.f32.mrb[0].mxu0
    %740 = vdwg.mxu0
    %741 = vmatprep.subr.bf16.mxu0 %v503
    %742 = vmatpush1.bf16.msra.mxu0 %v502
    %743 = vmatprep.subr.bf16.mxu0 %v511
    %744 = vmatpush1.bf16.msra.mxu0 %v510
    %745 = vmatprep.subr.bf16.mxu0 %v519
    %746 = vmatpush1.bf16.msra.mxu0 %v518
    %747 = vmatprep.subr.bf16.mxu0 %v527
    %748 = vmatpush1.bf16.msra.mxu0 %v526
    %749 = vmatprep.subr.bf16.mxu0 %v535
    %750 = vmatpush1.bf16.msra.mxu0 %v534
    %751 = vmatprep.subr.bf16.mxu0 %v543
    %752 = vmatpush1.bf16.msra.mxu0 %v542
    %753 = vmatprep.subr.bf16.mxu0 %v551
    %754 = vmatpush1.bf16.msra.mxu0 %v550
    %755 = vmatprep.subr.bf16.mxu0 %v559
    %756 = vmatpush1.bf16.msra.mxu0 %v558
    %757 = vmatprep.subr.bf16.mxu0 %v567
    %758 = vmatpush1.bf16.msra.mxu0 %v566
    %759 = vmatprep.subr.bf16.mxu0 %v575
    %760 = vmatpush1.bf16.msra.mxu0 %v574
    %761 = vmatprep.subr.bf16.mxu0 %v686
    %762 = vmatpush1.bf16.msra.mxu0 %v683
    %763 = vmatprep.subr.bf16.mxu0 0
    %764 = vmatpush1.bf16.msra.mxu0 0
    %765 = vmatprep.subr.bf16.mxu0 0
    %766 = vmatpush1.bf16.msra.mxu0 0
    %767 = vmatprep.subr.bf16.mxu0 0
    %768 = vmatpush1.bf16.msra.mxu0 0
    %769 = vmatprep.subr.bf16.mxu0 0
    %770 = vmatpush1.bf16.msra.mxu0 0
    %771 = vmatprep.subr.bf16.mxu0 0
    %772 = vmatpush1.bf16.msra.mxu0 0
    %773 = vmatprep.mubr.bf16.mxu0 %v670
    %774 = vmatmul.mubr.bf16.gmra.mrb[0].mxu0 %v120
    %v775 = vpop.f32.mrb[0].mxu0
    %v776 = vadd.f32 %v219, %v775
    %v777 = vpop.f32.mrb[0].mxu0
    %v778 = vadd.f32 %v223, %v777
    %v779 = vpop.f32.mrb[0].mxu0
    %v780 = vpop.f32.mrb[0].mxu0
    %781 = vdwg.mxu0
    %782 = vmatprep.subr.bf16.mxu0 %v505
    %783 = vmatpush1.bf16.msra.mxu0 %v504
    %784 = vmatprep.subr.bf16.mxu0 %v513
    %785 = vmatpush1.bf16.msra.mxu0 %v512
    %786 = vmatprep.subr.bf16.mxu0 %v521
    %787 = vmatpush1.bf16.msra.mxu0 %v520
    %788 = vmatprep.subr.bf16.mxu0 %v529
    %789 = vmatpush1.bf16.msra.mxu0 %v528
    %790 = vmatprep.subr.bf16.mxu0 %v537
    %791 = vmatpush1.bf16.msra.mxu0 %v536
    %792 = vmatprep.subr.bf16.mxu0 %v545
    %793 = vmatpush1.bf16.msra.mxu0 %v544
    %794 = vmatprep.subr.bf16.mxu0 %v553
    %795 = vmatpush1.bf16.msra.mxu0 %v552
    %796 = vmatprep.subr.bf16.mxu0 %v561
    %797 = vmatpush1.bf16.msra.mxu0 %v560
    %798 = vmatprep.subr.bf16.mxu0 %v569
    %799 = vmatpush1.bf16.msra.mxu0 %v568
    %800 = vmatprep.subr.bf16.mxu0 %v577
    %801 = vmatpush1.bf16.msra.mxu0 %v576
    %802 = vmatprep.subr.bf16.mxu0 %v692
    %803 = vmatpush1.bf16.msra.mxu0 %v689
    %804 = vmatprep.subr.bf16.mxu0 0
    %805 = vmatpush1.bf16.msra.mxu0 0
    %806 = vmatprep.subr.bf16.mxu0 0
    %807 = vmatpush1.bf16.msra.mxu0 0
    %808 = vmatprep.subr.bf16.mxu0 0
    %809 = vmatpush1.bf16.msra.mxu0 0
    %810 = vmatprep.subr.bf16.mxu0 0
    %811 = vmatpush1.bf16.msra.mxu0 0
    %812 = vmatprep.subr.bf16.mxu0 0
    %813 = vmatpush1.bf16.msra.mxu0 0
    %814 = vmatprep.mubr.bf16.mxu0 %v670
    %815 = vmatmul.mubr.bf16.gmra.mrb[0].mxu0 %v120
    %v816 = vpop.f32.mrb[0].mxu0
    %v817 = vadd.f32 %v227, %v816
    %v818 = vpop.f32.mrb[0].mxu0
    %v819 = vadd.f32 %v231, %v818
    %v820 = vpop.f32.mrb[0].mxu0
    %v821 = vpop.f32.mrb[0].mxu0
    %822 = vdwg.mxu0
    %823 = vmatprep.subr.bf16.mxu0 %v507
    %824 = vmatpush1.bf16.msra.mxu0 %v506
    %825 = vmatprep.subr.bf16.mxu0 %v515
    %826 = vmatpush1.bf16.msra.mxu0 %v514
    %827 = vmatprep.subr.bf16.mxu0 %v523
    %828 = vmatpush1.bf16.msra.mxu0 %v522
    %829 = vmatprep.subr.bf16.mxu0 %v531
    %830 = vmatpush1.bf16.msra.mxu0 %v530
    %831 = vmatprep.subr.bf16.mxu0 %v539
    %832 = vmatpush1.bf16.msra.mxu0 %v538
    %833 = vmatprep.subr.bf16.mxu0 %v547
    %834 = vmatpush1.bf16.msra.mxu0 %v546
    %835 = vmatprep.subr.bf16.mxu0 %v555
    %836 = vmatpush1.bf16.msra.mxu0 %v554
    %837 = vmatprep.subr.bf16.mxu0 %v563
    %838 = vmatpush1.bf16.msra.mxu0 %v562
    %839 = vmatprep.subr.bf16.mxu0 %v571
    %840 = vmatpush1.bf16.msra.mxu0 %v570
    %841 = vmatprep.subr.bf16.mxu0 %v579
    %842 = vmatpush1.bf16.msra.mxu0 %v578
    %843 = vmatprep.subr.bf16.mxu0 %v698
    %844 = vmatpush1.bf16.msra.mxu0 %v695
    %845 = vmatprep.subr.bf16.mxu0 0
    %846 = vmatpush1.bf16.msra.mxu0 0
    %847 = vmatprep.subr.bf16.mxu0 0
    %848 = vmatpush1.bf16.msra.mxu0 0
    %849 = vmatprep.subr.bf16.mxu0 0
    %850 = vmatpush1.bf16.msra.mxu0 0
    %851 = vmatprep.subr.bf16.mxu0 0
    %852 = vmatpush1.bf16.msra.mxu0 0
    %853 = vmatprep.subr.bf16.mxu0 0
    %854 = vmatpush1.bf16.msra.mxu0 0
    %855 = vmatprep.mubr.bf16.mxu0 %v670
    %856 = vmatmul.mubr.bf16.gmra.mrb[0].mxu0 %v120
    %v857 = vpop.f32.mrb[0].mxu0
    %v858 = vadd.f32 %v235, %v857
    %v859 = vpop.f32.mrb[0].mxu0
    %v860 = vadd.f32 %v239, %v859
    %v861 = vpop.f32.mrb[0].mxu0
    %v862 = vpop.f32.mrb[0].mxu0
    %863 = vdwg.mxu0
    %v864 = vmax.f32 %v735, 0.0
    %v865 = vmax.f32 %v737, 0.0
    %v866 = vmax.f32 %v776, 0.0
    %v867 = vmax.f32 %v778, 0.0
    %v868 = vmax.f32 %v817, 0.0
    %v869 = vmax.f32 %v819, 0.0
    %v870 = vmax.f32 %v858, 0.0
    %v871 = vmax.f32 %v860, 0.0
    %v872 = vpack.c.bf16 %v864, %v864
    %v873 = vpack.c.bf16 %v865, %v865
    %v874 = vpack.c.bf16 %v866, %v866
    %v875 = vpack.c.bf16 %v867, %v867
    %v876 = vpack.c.bf16 %v868, %v868
    %v877 = vpack.c.bf16 %v869, %v869
    %v878 = vpack.c.bf16 %v870, %v870
    %v879 = vpack.c.bf16 %v871, %v871
    %v880 = vld [vmem:[%s3] sm:$0xf]
    %v881 = vld [vmem:[%s3 + $0x4] sm:$0xf]
    %v882 = vld [vmem:[%s3 + $0x8] sm:$0xf]
    %v883 = vld [vmem:[%s3 + $0xc] sm:$0xf]
    %v884 = vld [vmem:[%s3 + $0x10] sm:$0xf]
    %v885 = vld [vmem:[%s3 + $0x14] sm:$0xf]
    %v886 = vld [vmem:[%s3 + $0x18] sm:$0xf]
    %v887 = vld [vmem:[%s3 + $0x1c] sm:$0xf]
    %v888 = vld [vmem:[%s3 + $0x20] sm:$0xf]
    %v889 = vld [vmem:[%s3 + $0x24] sm:$0xf]
    %v890 = vld [vmem:[%s3 + $0x28] sm:$0xf]
    %v891 = vld [vmem:[%s3 + $0x2c] sm:$0xf]
    %v892 = vld [vmem:[%s3 + $0x30] sm:$0xf]
    %v893 = vld [vmem:[%s3 + $0x34] sm:$0xf]
    %v894 = vld [vmem:[%s3 + $0x38] sm:$0xf]
    %v895 = vld [vmem:[%s3 + $0x3c] sm:$0xf]
    %v896 = vld [vmem:[%s3 + $0x40] sm:$0xf]
    %v897 = vld [vmem:[%s3 + $0x44] sm:$0xf]
    %v898 = vld [vmem:[%s3 + $0x48] sm:$0xf]
    %v899 = vld [vmem:[%s3 + $0x4c] sm:$0xf]
    %v900 = vld [vmem:[%s3 + $0x50] sm:$0xf]
    %v901 = vld [vmem:[%s3 + $0x54] sm:$0xf]
    %v902 = vld [vmem:[%s3 + $0x58] sm:$0xf]
    %v903 = vld [vmem:[%s3 + $0x5c] sm:$0xf]
    %v904 = vld [vmem:[%s3 + $0x60] sm:$0xf]
    %v905 = vld [vmem:[%s3 + $0x64] sm:$0xf]
    %v906 = vld [vmem:[%s3 + $0x68] sm:$0xf]
    %v907 = vld [vmem:[%s3 + $0x6c] sm:$0xf]
    %v908 = vld [vmem:[%s3 + $0x70] sm:$0xf]
    %v909 = vld [vmem:[%s3 + $0x74] sm:$0xf]
    %v910 = vld [vmem:[%s3 + $0x78] sm:$0xf]
    %v911 = vld [vmem:[%s3 + $0x7c] sm:$0xf]
    %v912 = vld [vmem:[%s3 + $0x80] sm:$0xf]
    %v913 = vld [vmem:[%s3 + $0x84] sm:$0xf]
    %v914 = vld [vmem:[%s3 + $0x88] sm:$0xf]
    %v915 = vld [vmem:[%s3 + $0x8c] sm:$0xf]
    %v916 = vld [vmem:[%s3 + $0x90] sm:$0xf]
    %v917 = vld [vmem:[%s3 + $0x94] sm:$0xf]
    %v918 = vld [vmem:[%s3 + $0x98] sm:$0xf]
    %v919 = vld [vmem:[%s3 + $0x9c] sm:$0xf]
    %v920 = vld [vmem:[%s3 + $0xa0] sm:$0xf]
    %v921 = vld [vmem:[%s3 + $0xa4] sm:$0xf]
    %v922 = vld [vmem:[%s3 + $0xa8] sm:$0xf]
    %v923 = vld [vmem:[%s3 + $0xac] sm:$0xf]
    %v924 = vld [vmem:[%s3 + $0xb0] sm:$0xf]
    %v925 = vld [vmem:[%s3 + $0xb4] sm:$0xf]
    %v926 = vld [vmem:[%s3 + $0xb8] sm:$0xf]
    %v927 = vld [vmem:[%s3 + $0xbc] sm:$0xf]
    %v928 = vld [vmem:[%s3 + $0xc0] sm:$0xf]
    %v929 = vld [vmem:[%s3 + $0xc4] sm:$0xf]
    %v930 = vld [vmem:[%s3 + $0xc8] sm:$0xf]
    %v931 = vld [vmem:[%s3 + $0xcc] sm:$0xf]
    %v932 = vld [vmem:[%s3 + $0xd0] sm:$0xf]
    %v933 = vld [vmem:[%s3 + $0xd4] sm:$0xf]
    %v934 = vld [vmem:[%s3 + $0xd8] sm:$0xf]
    %v935 = vld [vmem:[%s3 + $0xdc] sm:$0xf]
    %v936 = vld [vmem:[%s3 + $0xe0] sm:$0xf]
    %v937 = vld [vmem:[%s3 + $0xe4] sm:$0xf]
    %v938 = vld [vmem:[%s3 + $0xe8] sm:$0xf]
    %v939 = vld [vmem:[%s3 + $0xec] sm:$0xf]
    %v940 = vld [vmem:[%s3 + $0xf0] sm:$0xf]
    %v941 = vld [vmem:[%s3 + $0xf4] sm:$0xf]
    %v942 = vld [vmem:[%s3 + $0xf8] sm:$0xf]
    %v943 = vld [vmem:[%s3 + $0xfc] sm:$0xf]
    %v944 = vld [vmem:[%s3 + $0x100] sm:$0xf]
    %v945 = vld [vmem:[%s3 + $0x104] sm:$0xf]
    %v946 = vld [vmem:[%s3 + $0x108] sm:$0xf]
    %v947 = vld [vmem:[%s3 + $0x10c] sm:$0xf]
    %v948 = vld [vmem:[%s3 + $0x110] sm:$0xf]
    %v949 = vld [vmem:[%s3 + $0x114] sm:$0xf]
    %v950 = vld [vmem:[%s3 + $0x118] sm:$0xf]
    %v951 = vld [vmem:[%s3 + $0x11c] sm:$0xf]
    %v952 = vld [vmem:[%s3 + $0x120] sm:$0xf]
    %v953 = vld [vmem:[%s3 + $0x124] sm:$0xf]
    %v954 = vld [vmem:[%s3 + $0x128] sm:$0xf]
    %v955 = vld [vmem:[%s3 + $0x12c] sm:$0xf]
    %v956 = vld [vmem:[%s3 + $0x130] sm:$0xf]
    %v957 = vld [vmem:[%s3 + $0x134] sm:$0xf]
    %v958 = vld [vmem:[%s3 + $0x138] sm:$0xf]
    %v959 = vld [vmem:[%s3 + $0x13c] sm:$0xf]
    %v960 = vld [vmem:[%s3 + $0x140] sm:$0xf]
    %v961 = vld [vmem:[%s3 + $0x144] sm:$0xf]
    %v962 = vld [vmem:[%s3 + $0x148] sm:$0xf]
    %v963 = vld [vmem:[%s3 + $0x14c] sm:$0xf]
    %v964 = vld [vmem:[%s3 + $0x150] sm:$0xf]
    %v965 = vld [vmem:[%s3 + $0x154] sm:$0xf]
    %v966 = vld [vmem:[%s3 + $0x158] sm:$0xf]
    %v967 = vld [vmem:[%s3 + $0x15c] sm:$0xf]
    %v968 = vld [vmem:[%s3 + $0x160] sm:$0xf]
    %v969 = vld [vmem:[%s3 + $0x164] sm:$0xf]
    %v970 = vld [vmem:[%s3 + $0x168] sm:$0xf]
    %v971 = vld [vmem:[%s3 + $0x16c] sm:$0xf]
    %v972 = vld [vmem:[%s3 + $0x170] sm:$0xf]
    %v973 = vld [vmem:[%s3 + $0x174] sm:$0xf]
    %v974 = vld [vmem:[%s3 + $0x178] sm:$0xf]
    %v975 = vld [vmem:[%s3 + $0x17c] sm:$0xf]
    %v976 = vld [vmem:[%s3 + $0x180] sm:$0xf]
    %v977 = vld [vmem:[%s3 + $0x184] sm:$0xf]
    %v978 = vld [vmem:[%s3 + $0x188] sm:$0xf]
    %v979 = vld [vmem:[%s3 + $0x18c] sm:$0xf]
    %v980 = vld [vmem:[%s3 + $0x190] sm:$0xf]
    %v981 = vld [vmem:[%s3 + $0x194] sm:$0xf]
    %v982 = vld [vmem:[%s3 + $0x198] sm:$0xf]
    %v983 = vld [vmem:[%s3 + $0x19c] sm:$0xf]
    %v984 = vld [vmem:[%s3 + $0x1a0] sm:$0xf]
    %v985 = vld [vmem:[%s3 + $0x1a4] sm:$0xf]
    %v986 = vld [vmem:[%s3 + $0x1a8] sm:$0xf]
    %v987 = vld [vmem:[%s3 + $0x1ac] sm:$0xf]
    %v988 = vld [vmem:[%s3 + $0x1b0] sm:$0xf]
    %v989 = vld [vmem:[%s3 + $0x1b4] sm:$0xf]
    %v990 = vld [vmem:[%s3 + $0x1b8] sm:$0xf]
    %v991 = vld [vmem:[%s3 + $0x1bc] sm:$0xf]
    %v992 = vld [vmem:[%s3 + $0x1c0] sm:$0xf]
    %v993 = vld [vmem:[%s3 + $0x1c4] sm:$0xf]
    %v994 = vld [vmem:[%s3 + $0x1c8] sm:$0xf]
    %v995 = vld [vmem:[%s3 + $0x1cc] sm:$0xf]
    %v996 = vld [vmem:[%s3 + $0x1d0] sm:$0xf]
    %v997 = vld [vmem:[%s3 + $0x1d4] sm:$0xf]
    %v998 = vld [vmem:[%s3 + $0x1d8] sm:$0xf]
    %v999 = vld [vmem:[%s3 + $0x1dc] sm:$0xf]
    %v1000 = vld [vmem:[%s3 + $0x1e0] sm:$0xf]
    %v1001 = vld [vmem:[%s3 + $0x1e4] sm:$0xf]
    %v1002 = vld [vmem:[%s3 + $0x1e8] sm:$0xf]
    %v1003 = vld [vmem:[%s3 + $0x1ec] sm:$0xf]
    %v1004 = vld [vmem:[%s3 + $0x1f0] sm:$0xf]
    %v1005 = vld [vmem:[%s3 + $0x1f4] sm:$0xf]
    %v1006 = vld [vmem:[%s3 + $0x1f8] sm:$0xf]
    %v1007 = vld [vmem:[%s3 + $0x1fc] sm:$0xf]
    %v1008 = vld [vmem:[%s4] sm:$0x1]
    %v1010 = vlaneseq
    %v1011 = vshrl.u32 %v1010, 7
    %v1012 = vsub.s32 0, %v1011
    %v1013 = vrot.slane %v1008, %v1012
    %v1143 = vunpack.c.l.b16 %v880
    %v1144 = vunpack.c.l.b16 %v881
    %v1145 = vunpack.c.l.b16 %v882
    %v1146 = vunpack.c.l.b16 %v883
    %v1147 = vunpack.c.l.b16 %v884
    %v1148 = vunpack.c.l.b16 %v885
    %v1149 = vunpack.c.l.b16 %v886
    %v1150 = vunpack.c.l.b16 %v887
    %v1151 = vunpack.c.l.b16 %v888
    %v1152 = vunpack.c.l.b16 %v889
    %v1153 = vunpack.c.l.b16 %v890
    %v1154 = vunpack.c.l.b16 %v891
    %v1155 = vunpack.c.l.b16 %v892
    %v1156 = vunpack.c.l.b16 %v893
    %v1157 = vunpack.c.l.b16 %v894
    %v1158 = vunpack.c.l.b16 %v895
    %v1159 = vunpack.c.l.b16 %v896
    %v1160 = vunpack.c.l.b16 %v897
    %v1161 = vunpack.c.l.b16 %v898
    %v1162 = vunpack.c.l.b16 %v899
    %v1163 = vunpack.c.l.b16 %v900
    %v1164 = vunpack.c.l.b16 %v901
    %v1165 = vunpack.c.l.b16 %v902
    %v1166 = vunpack.c.l.b16 %v903
    %v1167 = vunpack.c.l.b16 %v904
    %v1168 = vunpack.c.l.b16 %v905
    %v1169 = vunpack.c.l.b16 %v906
    %v1170 = vunpack.c.l.b16 %v907
    %v1171 = vunpack.c.l.b16 %v908
    %v1172 = vunpack.c.l.b16 %v909
    %v1173 = vunpack.c.l.b16 %v910
    %v1174 = vunpack.c.l.b16 %v911
    %v1175 = vunpack.c.l.b16 %v912
    %v1176 = vunpack.c.l.b16 %v913
    %v1177 = vunpack.c.l.b16 %v914
    %v1178 = vunpack.c.l.b16 %v915
    %v1179 = vunpack.c.l.b16 %v916
    %v1180 = vunpack.c.l.b16 %v917
    %v1181 = vunpack.c.l.b16 %v918
    %v1182 = vunpack.c.l.b16 %v919
    %v1183 = vunpack.c.l.b16 %v920
    %v1184 = vunpack.c.l.b16 %v921
    %v1185 = vunpack.c.l.b16 %v922
    %v1186 = vunpack.c.l.b16 %v923
    %v1187 = vunpack.c.l.b16 %v924
    %v1188 = vunpack.c.l.b16 %v925
    %v1189 = vunpack.c.l.b16 %v926
    %v1190 = vunpack.c.l.b16 %v927
    %v1191 = vunpack.c.l.b16 %v928
    %v1192 = vunpack.c.l.b16 %v929
    %v1193 = vunpack.c.l.b16 %v930
    %v1194 = vunpack.c.l.b16 %v931
    %v1195 = vunpack.c.l.b16 %v932
    %v1196 = vunpack.c.l.b16 %v933
    %v1197 = vunpack.c.l.b16 %v934
    %v1198 = vunpack.c.l.b16 %v935
    %v1199 = vunpack.c.l.b16 %v936
    %v1200 = vunpack.c.l.b16 %v937
    %v1201 = vunpack.c.l.b16 %v938
    %v1202 = vunpack.c.l.b16 %v939
    %v1203 = vunpack.c.l.b16 %v940
    %v1204 = vunpack.c.l.b16 %v941
    %v1205 = vunpack.c.l.b16 %v942
    %v1206 = vunpack.c.l.b16 %v943
    %v1207 = vunpack.c.l.b16 %v944
    %v1208 = vunpack.c.l.b16 %v945
    %v1209 = vunpack.c.l.b16 %v946
    %v1210 = vunpack.c.l.b16 %v947
    %v1211 = vunpack.c.l.b16 %v948
    %v1212 = vunpack.c.l.b16 %v949
    %v1213 = vunpack.c.l.b16 %v950
    %v1214 = vunpack.c.l.b16 %v951
    %v1215 = vunpack.c.l.b16 %v952
    %v1216 = vunpack.c.l.b16 %v953
    %v1217 = vunpack.c.l.b16 %v954
    %v1218 = vunpack.c.l.b16 %v955
    %v1219 = vunpack.c.l.b16 %v956
    %v1220 = vunpack.c.l.b16 %v957
    %v1221 = vunpack.c.l.b16 %v958
    %v1222 = vunpack.c.l.b16 %v959
    %v1223 = vunpack.c.l.b16 %v960
    %v1224 = vunpack.c.l.b16 %v961
    %v1225 = vunpack.c.l.b16 %v962
    %v1226 = vunpack.c.l.b16 %v963
    %v1227 = vunpack.c.l.b16 %v964
    %v1228 = vunpack.c.l.b16 %v965
    %v1229 = vunpack.c.l.b16 %v966
    %v1230 = vunpack.c.l.b16 %v967
    %v1231 = vunpack.c.l.b16 %v968
    %v1232 = vunpack.c.l.b16 %v969
    %v1233 = vunpack.c.l.b16 %v970
    %v1234 = vunpack.c.l.b16 %v971
    %v1235 = vunpack.c.l.b16 %v972
    %v1236 = vunpack.c.l.b16 %v973
    %v1237 = vunpack.c.l.b16 %v974
    %v1238 = vunpack.c.l.b16 %v975
    %v1239 = vunpack.c.l.b16 %v976
    %v1240 = vunpack.c.l.b16 %v977
    %v1241 = vunpack.c.l.b16 %v978
    %v1242 = vunpack.c.l.b16 %v979
    %v1243 = vunpack.c.l.b16 %v980
    %v1244 = vunpack.c.l.b16 %v981
    %v1245 = vunpack.c.l.b16 %v982
    %v1246 = vunpack.c.l.b16 %v983
    %v1247 = vunpack.c.l.b16 %v984
    %v1248 = vunpack.c.l.b16 %v985
    %v1249 = vunpack.c.l.b16 %v986
    %v1250 = vunpack.c.l.b16 %v987
    %v1251 = vunpack.c.l.b16 %v988
    %v1252 = vunpack.c.l.b16 %v989
    %v1253 = vunpack.c.l.b16 %v990
    %v1254 = vunpack.c.l.b16 %v991
    %v1255 = vunpack.c.l.b16 %v992
    %v1256 = vunpack.c.l.b16 %v993
    %v1257 = vunpack.c.l.b16 %v994
    %v1258 = vunpack.c.l.b16 %v995
    %v1259 = vunpack.c.l.b16 %v996
    %v1260 = vunpack.c.l.b16 %v997
    %v1261 = vunpack.c.l.b16 %v998
    %v1262 = vunpack.c.l.b16 %v999
    %v1263 = vunpack.c.l.b16 %v1000
    %v1264 = vunpack.c.l.b16 %v1001
    %v1265 = vunpack.c.l.b16 %v1002
    %v1266 = vunpack.c.l.b16 %v1003
    %v1267 = vunpack.c.l.b16 %v1004
    %v1268 = vunpack.c.l.b16 %v1005
    %v1269 = vunpack.c.l.b16 %v1006
    %v1270 = vunpack.c.l.b16 %v1007
    %v1271 = vpack.c.b16 %v1144, %v1143
    %v1272 = vpack.c.b16 %v1146, %v1145
    %v1273 = vpack.c.b16 %v1148, %v1147
    %v1274 = vpack.c.b16 %v1150, %v1149
    %v1275 = vpack.c.b16 %v1152, %v1151
    %v1276 = vpack.c.b16 %v1154, %v1153
    %v1277 = vpack.c.b16 %v1156, %v1155
    %v1278 = vpack.c.b16 %v1158, %v1157
    %v1279 = vpack.c.b16 %v1160, %v1159
    %v1280 = vpack.c.b16 %v1162, %v1161
    %v1281 = vpack.c.b16 %v1164, %v1163
    %v1282 = vpack.c.b16 %v1166, %v1165
    %v1283 = vpack.c.b16 %v1168, %v1167
    %v1284 = vpack.c.b16 %v1170, %v1169
    %v1285 = vpack.c.b16 %v1172, %v1171
    %v1286 = vpack.c.b16 %v1174, %v1173
    %v1287 = vpack.c.b16 %v1176, %v1175
    %v1288 = vpack.c.b16 %v1178, %v1177
    %v1289 = vpack.c.b16 %v1180, %v1179
    %v1290 = vpack.c.b16 %v1182, %v1181
    %v1291 = vpack.c.b16 %v1184, %v1183
    %v1292 = vpack.c.b16 %v1186, %v1185
    %v1293 = vpack.c.b16 %v1188, %v1187
    %v1294 = vpack.c.b16 %v1190, %v1189
    %v1295 = vpack.c.b16 %v1192, %v1191
    %v1296 = vpack.c.b16 %v1194, %v1193
    %v1297 = vpack.c.b16 %v1196, %v1195
    %v1298 = vpack.c.b16 %v1198, %v1197
    %v1299 = vpack.c.b16 %v1200, %v1199
    %v1300 = vpack.c.b16 %v1202, %v1201
    %v1301 = vpack.c.b16 %v1204, %v1203
    %v1302 = vpack.c.b16 %v1206, %v1205
    %v1303 = vpack.c.b16 %v1208, %v1207
    %v1304 = vpack.c.b16 %v1210, %v1209
    %v1305 = vpack.c.b16 %v1212, %v1211
    %v1306 = vpack.c.b16 %v1214, %v1213
    %v1307 = vpack.c.b16 %v1216, %v1215
    %v1308 = vpack.c.b16 %v1218, %v1217
    %v1309 = vpack.c.b16 %v1220, %v1219
    %v1310 = vpack.c.b16 %v1222, %v1221
    %v1311 = vpack.c.b16 %v1224, %v1223
    %v1312 = vpack.c.b16 %v1226, %v1225
    %v1313 = vpack.c.b16 %v1228, %v1227
    %v1314 = vpack.c.b16 %v1230, %v1229
    %v1315 = vpack.c.b16 %v1232, %v1231
    %v1316 = vpack.c.b16 %v1234, %v1233
    %v1317 = vpack.c.b16 %v1236, %v1235
    %v1318 = vpack.c.b16 %v1238, %v1237
    %v1319 = vpack.c.b16 %v1240, %v1239
    %v1320 = vpack.c.b16 %v1242, %v1241
    %v1321 = vpack.c.b16 %v1244, %v1243
    %v1322 = vpack.c.b16 %v1246, %v1245
    %v1323 = vpack.c.b16 %v1248, %v1247
    %v1324 = vpack.c.b16 %v1250, %v1249
    %v1325 = vpack.c.b16 %v1252, %v1251
    %v1326 = vpack.c.b16 %v1254, %v1253
    %v1327 = vpack.c.b16 %v1256, %v1255
    %v1328 = vpack.c.b16 %v1258, %v1257
    %v1329 = vpack.c.b16 %v1260, %v1259
    %v1330 = vpack.c.b16 %v1262, %v1261
    %v1331 = vpack.c.b16 %v1264, %v1263
    %v1332 = vpack.c.b16 %v1266, %v1265
    %v1333 = vpack.c.b16 %v1268, %v1267
    %v1334 = vpack.c.b16 %v1270, %v1269
    %1399 = vmatprep.subr.bf16.mxu0 0
    %1400 = vmatpush1.bf16.msra.mxu0 %v1271
    %1401 = vmatprep.subr.bf16.mxu0 0
    %1402 = vmatpush1.bf16.msra.mxu0 %v1272
    %1403 = vmatprep.subr.bf16.mxu0 0
    %1404 = vmatpush1.bf16.msra.mxu0 %v1273
    %1405 = vmatprep.subr.bf16.mxu0 0
    %1406 = vmatpush1.bf16.msra.mxu0 %v1274
    %1407 = vmatprep.subr.bf16.mxu0 0
    %1408 = vmatpush1.bf16.msra.mxu0 %v1275
    %1409 = vmatprep.subr.bf16.mxu0 0
    %1410 = vmatpush1.bf16.msra.mxu0 %v1276
    %1411 = vmatprep.subr.bf16.mxu0 0
    %1412 = vmatpush1.bf16.msra.mxu0 %v1277
    %1413 = vmatprep.subr.bf16.mxu0 0
    %1414 = vmatpush1.bf16.msra.mxu0 %v1278
    %1415 = vmatprep.subr.bf16.mxu0 0
    %1416 = vmatpush1.bf16.msra.mxu0 %v1279
    %1417 = vmatprep.subr.bf16.mxu0 0
    %1418 = vmatpush1.bf16.msra.mxu0 %v1280
    %1419 = vmatprep.subr.bf16.mxu0 0
    %1420 = vmatpush1.bf16.msra.mxu0 %v1281
    %1421 = vmatprep.subr.bf16.mxu0 0
    %1422 = vmatpush1.bf16.msra.mxu0 %v1282
    %1423 = vmatprep.subr.bf16.mxu0 0
    %1424 = vmatpush1.bf16.msra.mxu0 %v1283
    %1425 = vmatprep.subr.bf16.mxu0 0
    %1426 = vmatpush1.bf16.msra.mxu0 %v1284
    %1427 = vmatprep.subr.bf16.mxu0 0
    %1428 = vmatpush1.bf16.msra.mxu0 %v1285
    %1429 = vmatprep.subr.bf16.mxu0 0
    %1430 = vmatpush1.bf16.msra.mxu0 %v1286
    %1431 = vmatprep.mubr.bf16.mxu0 %v873
    %1432 = vmatmul.mubr.bf16.gmra.mrb[0].mxu0 %v872
    %v1433 = vpop.f32.mrb[0].mxu0
    %v1434 = vadd.f32 %v1013, %v1433
    %v1435 = vpop.f32.mrb[0].mxu0
    %v1436 = vpop.f32.mrb[0].mxu0
    %v1437 = vpop.f32.mrb[0].mxu0
    %1438 = vdwg.mxu0
    %1439 = vmatprep.subr.bf16.mxu0 0
    %1440 = vmatpush1.bf16.msra.mxu0 %v1287
    %1441 = vmatprep.subr.bf16.mxu0 0
    %1442 = vmatpush1.bf16.msra.mxu0 %v1288
    %1443 = vmatprep.subr.bf16.mxu0 0
    %1444 = vmatpush1.bf16.msra.mxu0 %v1289
    %1445 = vmatprep.subr.bf16.mxu0 0
    %1446 = vmatpush1.bf16.msra.mxu0 %v1290
    %1447 = vmatprep.subr.bf16.mxu0 0
    %1448 = vmatpush1.bf16.msra.mxu0 %v1291
    %1449 = vmatprep.subr.bf16.mxu0 0
    %1450 = vmatpush1.bf16.msra.mxu0 %v1292
    %1451 = vmatprep.subr.bf16.mxu0 0
    %1452 = vmatpush1.bf16.msra.mxu0 %v1293
    %1453 = vmatprep.subr.bf16.mxu0 0
    %1454 = vmatpush1.bf16.msra.mxu0 %v1294
    %1455 = vmatprep.subr.bf16.mxu0 0
    %1456 = vmatpush1.bf16.msra.mxu0 %v1295
    %1457 = vmatprep.subr.bf16.mxu0 0
    %1458 = vmatpush1.bf16.msra.mxu0 %v1296
    %1459 = vmatprep.subr.bf16.mxu0 0
    %1460 = vmatpush1.bf16.msra.mxu0 %v1297
    %1461 = vmatprep.subr.bf16.mxu0 0
    %1462 = vmatpush1.bf16.msra.mxu0 %v1298
    %1463 = vmatprep.subr.bf16.mxu0 0
    %1464 = vmatpush1.bf16.msra.mxu0 %v1299
    %1465 = vmatprep.subr.bf16.mxu0 0
    %1466 = vmatpush1.bf16.msra.mxu0 %v1300
    %1467 = vmatprep.subr.bf16.mxu0 0
    %1468 = vmatpush1.bf16.msra.mxu0 %v1301
    %1469 = vmatprep.subr.bf16.mxu0 0
    %1470 = vmatpush1.bf16.msra.mxu0 %v1302
    %1471 = vmatprep.mubr.bf16.mxu0 %v875
    %1472 = vmatmul.mubr.bf16.gmra.mrb[0].mxu0 %v874
    %v1473 = vpop.f32.mrb[0].mxu0
    %v1474 = vadd.f32 %v1434, %v1473
    %v1475 = vpop.f32.mrb[0].mxu0
    %v1476 = vpop.f32.mrb[0].mxu0
    %v1477 = vpop.f32.mrb[0].mxu0
    %1478 = vdwg.mxu0
    %1479 = vmatprep.subr.bf16.mxu0 0
    %1480 = vmatpush1.bf16.msra.mxu0 %v1303
    %1481 = vmatprep.subr.bf16.mxu0 0
    %1482 = vmatpush1.bf16.msra.mxu0 %v1304
    %1483 = vmatprep.subr.bf16.mxu0 0
    %1484 = vmatpush1.bf16.msra.mxu0 %v1305
    %1485 = vmatprep.subr.bf16.mxu0 0
    %1486 = vmatpush1.bf16.msra.mxu0 %v1306
    %1487 = vmatprep.subr.bf16.mxu0 0
    %1488 = vmatpush1.bf16.msra.mxu0 %v1307
    %1489 = vmatprep.subr.bf16.mxu0 0
    %1490 = vmatpush1.bf16.msra.mxu0 %v1308
    %1491 = vmatprep.subr.bf16.mxu0 0
    %1492 = vmatpush1.bf16.msra.mxu0 %v1309
    %1493 = vmatprep.subr.bf16.mxu0 0
    %1494 = vmatpush1.bf16.msra.mxu0 %v1310
    %1495 = vmatprep.subr.bf16.mxu0 0
    %1496 = vmatpush1.bf16.msra.mxu0 %v1311
    %1497 = vmatprep.subr.bf16.mxu0 0
    %1498 = vmatpush1.bf16.msra.mxu0 %v1312
    %1499 = vmatprep.subr.bf16.mxu0 0
    %1500 = vmatpush1.bf16.msra.mxu0 %v1313
    %1501 = vmatprep.subr.bf16.mxu0 0
    %1502 = vmatpush1.bf16.msra.mxu0 %v1314
    %1503 = vmatprep.subr.bf16.mxu0 0
    %1504 = vmatpush1.bf16.msra.mxu0 %v1315
    %1505 = vmatprep.subr.bf16.mxu0 0
    %1506 = vmatpush1.bf16.msra.mxu0 %v1316
    %1507 = vmatprep.subr.bf16.mxu0 0
    %1508 = vmatpush1.bf16.msra.mxu0 %v1317
    %1509 = vmatprep.subr.bf16.mxu0 0
    %1510 = vmatpush1.bf16.msra.mxu0 %v1318
    %1511 = vmatprep.mubr.bf16.mxu0 %v877
    %1512 = vmatmul.mubr.bf16.gmra.mrb[0].mxu0 %v876
    %v1513 = vpop.f32.mrb[0].mxu0
    %v1514 = vadd.f32 %v1474, %v1513
    %v1515 = vpop.f32.mrb[0].mxu0
    %v1516 = vpop.f32.mrb[0].mxu0
    %v1517 = vpop.f32.mrb[0].mxu0
    %1518 = vdwg.mxu0
    %1519 = vmatprep.subr.bf16.mxu0 0
    %1520 = vmatpush1.bf16.msra.mxu0 %v1319
    %1521 = vmatprep.subr.bf16.mxu0 0
    %1522 = vmatpush1.bf16.msra.mxu0 %v1320
    %1523 = vmatprep.subr.bf16.mxu0 0
    %1524 = vmatpush1.bf16.msra.mxu0 %v1321
    %1525 = vmatprep.subr.bf16.mxu0 0
    %1526 = vmatpush1.bf16.msra.mxu0 %v1322
    %1527 = vmatprep.subr.bf16.mxu0 0
    %1528 = vmatpush1.bf16.msra.mxu0 %v1323
    %1529 = vmatprep.subr.bf16.mxu0 0
    %1530 = vmatpush1.bf16.msra.mxu0 %v1324
    %1531 = vmatprep.subr.bf16.mxu0 0
    %1532 = vmatpush1.bf16.msra.mxu0 %v1325
    %1533 = vmatprep.subr.bf16.mxu0 0
    %1534 = vmatpush1.bf16.msra.mxu0 %v1326
    %1535 = vmatprep.subr.bf16.mxu0 0
    %1536 = vmatpush1.bf16.msra.mxu0 %v1327
    %1537 = vmatprep.subr.bf16.mxu0 0
    %1538 = vmatpush1.bf16.msra.mxu0 %v1328
    %1539 = vmatprep.subr.bf16.mxu0 0
    %1540 = vmatpush1.bf16.msra.mxu0 %v1329
    %1541 = vmatprep.subr.bf16.mxu0 0
    %1542 = vmatpush1.bf16.msra.mxu0 %v1330
    %1543 = vmatprep.subr.bf16.mxu0 0
    %1544 = vmatpush1.bf16.msra.mxu0 %v1331
    %1545 = vmatprep.subr.bf16.mxu0 0
    %1546 = vmatpush1.bf16.msra.mxu0 %v1332
    %1547 = vmatprep.subr.bf16.mxu0 0
    %1548 = vmatpush1.bf16.msra.mxu0 %v1333
    %1549 = vmatprep.subr.bf16.mxu0 0
    %1550 = vmatpush1.bf16.msra.mxu0 %v1334
    %1551 = vmatprep.mubr.bf16.mxu0 %v879
    %1552 = vmatmul.mubr.bf16.gmra.mrb[0].mxu0 %v878
    %v1553 = vpop.f32.mrb[0].mxu0
    %v1554 = vadd.f32 %v1514, %v1553
    %v1555 = vpop.f32.mrb[0].mxu0
    %v1556 = vpop.f32.mrb[0].mxu0
    %v1557 = vpop.f32.mrb[0].mxu0
    %1558 = vdwg.mxu0
    %vm1559 = vcmask 113664
    %1560 = vst.msk [vmem:[#allocation5] sm:$0xff] %vm1559, %v1554
    // Predicated region
    $region26: #{net_forward.1} parent=1 // pred_check
      _
    $region27: #{net_forward.1} parent=1 // pred_check_branch
      %1562 = sbr.rel (0) target = $region29
    $region28: #{net_forward.1} parent=1 // pred_region
      %s1564 = ssub.s32 128, 16
      %1565 = vsyncadd [#allocation4], %s1564
      %s1566 = sshll.u32 [#allocation5], 4
      %s1567 = int_to_ptr.vmem [resolvable:$true] %s1566
      %1572 = dma.vmem_to_hbm [thread:$0]  %s1567, 16, %s5, [#allocation4], 16, 16, 1
    $region29: #{net_forward.1} parent=1 // pred_fallthru
      _
    // Predicated region
    $region30: #{net_forward.1} parent=1 // pred_check
      _
    $region31: #{net_forward.1} parent=1 // pred_check_branch
      %1574 = sbr.rel (0) target = $region33
    $region32: #{net_forward.1} parent=1 // pred_region
      %1575 = dma.done [#allocation4], 128
    $region33: #{net_forward.1} parent=1 // pred_fallthru
      _
    %1576 = vsyncpa [#allocation3], 1
    %1577 = vsyncpa [#allocation4], 1

</llo_original>
